<compile_context>
chip_gen: v5e
topology: v5e:2x2
jax: 0.10.0
libtpu: 0.0.40
codegen_flags: <defaults>
</compile_context>

<pallas_src>
import jax
import jax.numpy as jnp
from jax.experimental import pallas as pl
from jax.experimental.pallas import tpu as pltpu


def _round_up(n, m):
    return ((n + m - 1) // m) * m


def _edge_model_kernel(ea_ref, g_ref, we_ref, be_ref, mw_ref, mb_ref, o_ref):
    # Input projection: Lin(edge_attr) on the MXU (bf16 operands, f32 accum),
    # then add the pre-gathered node-projection sum g and the bias in f32.
    f = jnp.dot(ea_ref[...], we_ref[...], preferred_element_type=jnp.float32)
    f = f + g_ref[...].astype(jnp.float32) + be_ref[...]
    h = jnp.maximum(f, 0.0)  # bias/ReLU kept in f32 (v5e VPU has no bf16 path)

    # MLP: num_layers x (Linear + ReLU) + final Linear, statically unrolled
    # (L is small; switch to lax.fori_loop(unroll=True) if L grows).
    n_lin = mw_ref.shape[0]
    for l in range(n_lin - 1):
        h = jnp.dot(h.astype(mw_ref.dtype), mw_ref[l],
                    preferred_element_type=jnp.float32) + mb_ref[l]
        h = jnp.maximum(h, 0.0)
    h = jnp.dot(h.astype(mw_ref.dtype), mw_ref[n_lin - 1],
                preferred_element_type=jnp.float32) + mb_ref[n_lin - 1]
    o_ref[...] = h.astype(o_ref.dtype)


def edge_model_forward(x, edge_attr, edge_index, params, *, tile_e=8192,
                       mxu_dtype=jnp.bfloat16, out_dtype=jnp.bfloat16):
    """x: [N, H], edge_attr: [E, H], edge_index: [2, E] int32 -> [E, H]."""
    H = x.shape[1]
    E = edge_attr.shape[0]
    if E == 0:
        return jnp.zeros((0, H), out_dtype)
    row, col = edge_index[0], edge_index[1]

    # Lane packing factor: pack PACK rows of width H into one 128-lane row.
    PACK = 128 // H if (H <= 128 and 128 % H == 0) else 1
    Hp = PACK * H

    # Pre-project the (tiny) node features once and fuse the two gathers into a
    # single bf16 [E, H] stream; the edge-sized Lin(edge_attr) matmul and the
    # whole MLP stay in-kernel.
    # TODO(synk): move this gather in-kernel (scalar-prefetched row/col with the
    # projected node table resident in VMEM) once dynamic sublane gather into
    # packed lanes lowers dependably; the wrapper-side jnp gather keeps this
    # version robust.
    xi = x.astype(jnp.float32) @ params["win"]
    xj = x.astype(jnp.float32) @ params["wout"]
    g = (xi[row] + xj[col]).astype(mxu_dtype)        # [E, H] bf16
    ea = edge_attr.astype(mxu_dtype)                 # [E, H] bf16

    # Edge tiling: bf16 sublane packing wants multiples of 16 packed rows, i.e.
    # 16*PACK edges.  Big default tile amortizes the ~0.35us/grid-step overhead;
    # keep >= 2 grid steps when there is enough work (v7x megacore: both TCs).
    gran = 16 * PACK
    e_ceil = _round_up(E, gran)
    tile = max(gran, (min(tile_e, e_ceil) // gran) * gran)
    if e_ceil >= 2 * gran and tile >= e_ceil:
        tile = max(gran, ((e_ceil // 2) // gran) * gran)
    e_pad = _round_up(E, tile)
    if e_pad != E:
        pad = ((0, e_pad - E), (0, 0))
        ea = jnp.pad(ea, pad)
        g = jnp.pad(g, pad)

    # Free row-major repack: [e_pad, H] -> [e_pad/PACK, PACK*H] (128 lanes).
    ea_p = ea.reshape(e_pad // PACK, Hp)
    g_p = g.reshape(e_pad // PACK, Hp)
    tile_p = tile // PACK

    # Block-diagonal weight replication so the packed math equals PACK
    # independent [., H] x [H, H] matmuls; biases tiled along lanes.
    eyeP = jnp.eye(PACK, dtype=jnp.float32)
    we_bd = jnp.kron(eyeP, params["we"]).astype(mxu_dtype)              # [Hp, Hp]
    be_t = jnp.tile(params["be"], (1, PACK)).astype(jnp.float32)        # [1, Hp]
    mw_bd = jnp.einsum("pq,lij->lpiqj", eyeP, params["mlp_w"]).reshape(
        params["mlp_w"].shape[0], Hp, Hp).astype(mxu_dtype)             # [L, Hp, Hp]
    mb_t = jnp.tile(params["mlp_b"], (1, 1, PACK)).astype(jnp.float32)  # [L, 1, Hp]
    L = mw_bd.shape[0]

    edge_spec = pl.BlockSpec((tile_p, Hp), lambda i: (i, 0))
    out_spec = pl.BlockSpec((tile_p, Hp), lambda i: (i, 0))

    # Grid-invariant weight/bias blocks: same block index every step, so the
    # pipeline fetches them once (tiny at H=32; revisit buffering for large H
    # against v7x's 64 MiB physical / 32 MiB default scoped VMEM).
    def const_spec(shape):
        nd = len(shape)
        return pl.BlockSpec(shape, lambda i, _nd=nd: (0,) * _nd)

    out_packed = pl.pallas_call(
        _edge_model_kernel,
        out_shape=jax.ShapeDtypeStruct((e_pad // PACK, Hp), out_dtype),
        grid_spec=pltpu.PrefetchScalarGridSpec(
            num_scalar_prefetch=0,
            grid=(e_pad // tile,),
            in_specs=[edge_spec,                 # edge_attr, packed bf16
                      edge_spec,                 # g = xi[row]+xj[col], packed bf16
                      const_spec((Hp, Hp)),      # We (block-diag)
                      const_spec((1, Hp)),       # be (lane-tiled, f32)
                      const_spec((L, Hp, Hp)),   # MLP weights (block-diag)
                      const_spec((L, 1, Hp))],   # MLP biases (lane-tiled, f32)
            out_specs=out_spec),
        compiler_params=pltpu.CompilerParams(
            dimension_semantics=("parallel",)),
    )(ea_p, g_p, we_bd, be_t, mw_bd, mb_t)

    return out_packed.reshape(e_pad, H)[:E]


def init_params(key, hidden_dim, n_layers, scale=0.1):
    """Deterministic synthetic parameters (weights stored as [in, out])."""
    ks = jax.random.split(key, 6)
    H = hidden_dim
    L = n_layers + 1  # n_layers hidden linears + final linear (the spec MLP)
    return {
        "we":    scale * jax.random.normal(ks[0], (H, H), jnp.float32),
        "be":    scale * jax.random.normal(ks[1], (1, H), jnp.float32),
        "win":   scale * jax.random.normal(ks[2], (H, H), jnp.float32),
        "wout":  scale * jax.random.normal(ks[3], (H, H), jnp.float32),
        "mlp_w": scale * jax.random.normal(ks[4], (L, H, H), jnp.float32),
        "mlp_b": scale * jax.random.normal(ks[5], (L, 1, H), jnp.float32),
    }


def reference_forward(x, edge_attr, edge_index, params):
    """Pure-JAX f32 reference mirroring the PyTorch module."""
    row, col = edge_index[0], edge_index[1]
    f = edge_attr @ params["we"] + params["be"][0]
    f = f + x[row] @ params["win"] + x[col] @ params["wout"]
    h = jnp.maximum(f, 0.0)
    L = params["mlp_w"].shape[0]
    for l in range(L - 1):
        h = jnp.maximum(h @ params["mlp_w"][l] + params["mlp_b"][l, 0], 0.0)
    return h @ params["mlp_w"][L - 1] + params["mlp_b"][L - 1, 0]


if __name__ == "__main__":
    hidden_dim = 32
    n_layers = 2
    num_nodes = 10
    num_edges = 200

    key = jax.random.PRNGKey(0)
    k_x, k_e, k_i, k_p = jax.random.split(key, 4)

    x = jax.random.normal(k_x, (num_nodes, hidden_dim), jnp.float32)
    edge_attr = jax.random.normal(k_e, (num_edges, hidden_dim), jnp.float32)
    edge_index = jax.random.randint(k_i, (2, num_edges), 0, num_nodes, jnp.int32)
    params = init_params(k_p, hidden_dim, n_layers)

    ref = reference_forward(x, edge_attr, edge_index, params)

    # Default path: large-tile clamp -> 2 grid steps (exercises megacore split).
    out = jax.block_until_ready(
        edge_model_forward(x, edge_attr, edge_index, params))
    # Small-tile path: exercises padding + multi-step pipelining.
    out_tiled = jax.block_until_ready(
        edge_model_forward(x, edge_attr, edge_index, params, tile_e=64))

    assert out.shape == (num_edges, hidden_dim)
    assert out_tiled.shape == (num_edges, hidden_dim)
    # bf16 MXU operands / bf16 output with f32 accumulation -> looser tolerance.
    out_f32 = out.astype(jnp.float32)
    out_tiled_f32 = out_tiled.astype(jnp.float32)
    assert jnp.allclose(out_f32, ref, rtol=3e-2, atol=3e-2), "mismatch vs reference"
    assert jnp.allclose(out_tiled_f32, ref, rtol=3e-2, atol=3e-2), "tiled mismatch vs reference"
    print("KERNEL_OK")
</pallas_src>

<mosaic_0001>
module attributes {stable_mosaic.version = 11 : i64} {
  func.func @_edge_model_kernel(%arg0: i32, %arg1: memref<32x128xbf16, #tpu.memory_space<vmem>>, %arg2: memref<32x128xbf16, #tpu.memory_space<vmem>>, %arg3: memref<128x128xbf16, #tpu.memory_space<vmem>>, %arg4: memref<1x128xf32, #tpu.memory_space<vmem>>, %arg5: memref<3x128x128xbf16, #tpu.memory_space<vmem>>, %arg6: memref<3x1x128xf32, #tpu.memory_space<vmem>>, %arg7: memref<32x128xbf16, #tpu.memory_space<vmem>>) attributes {dimension_semantics = [#tpu.dimension_semantics<parallel>], iteration_bounds = array<i64: 2>, scalar_prefetch = 0 : i64, scratch_operands = 0 : i64, tpu.core_type = #tpu.core_type<tc>, window_params = [{transform_indices = @transform_0, window_bounds = array<i64: 32, 128>}, {transform_indices = @transform_1, window_bounds = array<i64: 32, 128>}, {pipeline_mode = #tpu.pipeline_mode<synchronous>, transform_indices = @transform_2, window_bounds = array<i64: 128, 128>}, {pipeline_mode = #tpu.pipeline_mode<synchronous>, transform_indices = @transform_3, window_bounds = array<i64: 1, 128>}, {pipeline_mode = #tpu.pipeline_mode<synchronous>, transform_indices = @transform_4, window_bounds = array<i64: 3, 128, 128>}, {pipeline_mode = #tpu.pipeline_mode<synchronous>, transform_indices = @transform_5, window_bounds = array<i64: 3, 1, 128>}, {transform_indices = @transform_6, window_bounds = array<i64: 32, 128>}]} {
    %c0 = arith.constant 0 : index
    %c0_0 = arith.constant 0 : index
    %0 = vector.load %arg1[%c0, %c0_0] : memref<32x128xbf16, #tpu.memory_space<vmem>>, vector<32x128xbf16>
    %c0_1 = arith.constant 0 : index
    %c0_2 = arith.constant 0 : index
    %1 = vector.load %arg3[%c0_1, %c0_2] : memref<128x128xbf16, #tpu.memory_space<vmem>>, vector<128x128xbf16>
    %cst = arith.constant dense<0.000000e+00> : vector<32x128xf32>
    %2 = tpu.matmul %0, %1, %cst {dimension_numbers = #tpu.dot_dimension_numbers<[1], [0], [0], [1], [0, 0, 1, 1], [], []>} : vector<32x128xbf16>, vector<128x128xbf16>, vector<32x128xf32> -> vector<32x128xf32>
    %c0_3 = arith.constant 0 : index
    %c0_4 = arith.constant 0 : index
    %3 = vector.load %arg2[%c0_3, %c0_4] : memref<32x128xbf16, #tpu.memory_space<vmem>>, vector<32x128xbf16>
    %4 = arith.extf %3 : vector<32x128xbf16> to vector<32x128xf32>
    %5 = arith.addf %2, %4 : vector<32x128xf32>
    %c0_5 = arith.constant 0 : index
    %c0_6 = arith.constant 0 : index
    %6 = vector.load %arg4[%c0_5, %c0_6] : memref<1x128xf32, #tpu.memory_space<vmem>>, vector<1x128xf32>
    %7 = vector.broadcast %6 : vector<1x128xf32> to vector<32x128xf32>
    %8 = arith.addf %5, %7 : vector<32x128xf32>
    %cst_7 = arith.constant 0.000000e+00 : f32
    %9 = vector.broadcast %cst_7 : f32 to vector<32x128xf32>
    %10 = arith.maximumf %8, %9 : vector<32x128xf32>
    %11 = arith.truncf %10 : vector<32x128xf32> to vector<32x128xbf16>
    %c0_8 = arith.constant 0 : index
    %c0_9 = arith.constant 0 : index
    %c0_10 = arith.constant 0 : index
    %12 = vector.load %arg5[%c0_8, %c0_9, %c0_10] : memref<3x128x128xbf16, #tpu.memory_space<vmem>>, vector<1x128x128xbf16>
    %13 = vector.shape_cast %12 : vector<1x128x128xbf16> to vector<128x128xbf16>
    %cst_11 = arith.constant dense<0.000000e+00> : vector<32x128xf32>
    %14 = tpu.matmul %11, %13, %cst_11 {dimension_numbers = #tpu.dot_dimension_numbers<[1], [0], [0], [1], [0, 0, 1, 1], [], []>} : vector<32x128xbf16>, vector<128x128xbf16>, vector<32x128xf32> -> vector<32x128xf32>
    %c0_12 = arith.constant 0 : index
    %c0_13 = arith.constant 0 : index
    %c0_14 = arith.constant 0 : index
    %15 = vector.load %arg6[%c0_12, %c0_13, %c0_14] : memref<3x1x128xf32, #tpu.memory_space<vmem>>, vector<1x1x128xf32>
    %16 = vector.shape_cast %15 : vector<1x1x128xf32> to vector<1x128xf32>
    %17 = vector.broadcast %16 : vector<1x128xf32> to vector<32x128xf32>
    %18 = arith.addf %14, %17 : vector<32x128xf32>
    %cst_15 = arith.constant 0.000000e+00 : f32
    %19 = vector.broadcast %cst_15 : f32 to vector<32x128xf32>
    %20 = arith.maximumf %18, %19 : vector<32x128xf32>
    %21 = arith.truncf %20 : vector<32x128xf32> to vector<32x128xbf16>
    %c1 = arith.constant 1 : index
    %c0_16 = arith.constant 0 : index
    %c0_17 = arith.constant 0 : index
    %22 = vector.load %arg5[%c1, %c0_16, %c0_17] : memref<3x128x128xbf16, #tpu.memory_space<vmem>>, vector<1x128x128xbf16>
    %23 = vector.shape_cast %22 : vector<1x128x128xbf16> to vector<128x128xbf16>
    %cst_18 = arith.constant dense<0.000000e+00> : vector<32x128xf32>
    %24 = tpu.matmul %21, %23, %cst_18 {dimension_numbers = #tpu.dot_dimension_numbers<[1], [0], [0], [1], [0, 0, 1, 1], [], []>} : vector<32x128xbf16>, vector<128x128xbf16>, vector<32x128xf32> -> vector<32x128xf32>
    %c1_19 = arith.constant 1 : index
    %c0_20 = arith.constant 0 : index
    %c0_21 = arith.constant 0 : index
    %25 = vector.load %arg6[%c1_19, %c0_20, %c0_21] : memref<3x1x128xf32, #tpu.memory_space<vmem>>, vector<1x1x128xf32>
    %26 = vector.shape_cast %25 : vector<1x1x128xf32> to vector<1x128xf32>
    %27 = vector.broadcast %26 : vector<1x128xf32> to vector<32x128xf32>
    %28 = arith.addf %24, %27 : vector<32x128xf32>
    %cst_22 = arith.constant 0.000000e+00 : f32
    %29 = vector.broadcast %cst_22 : f32 to vector<32x128xf32>
    %30 = arith.maximumf %28, %29 : vector<32x128xf32>
    %31 = arith.truncf %30 : vector<32x128xf32> to vector<32x128xbf16>
    %c2 = arith.constant 2 : index
    %c0_23 = arith.constant 0 : index
    %c0_24 = arith.constant 0 : index
    %32 = vector.load %arg5[%c2, %c0_23, %c0_24] : memref<3x128x128xbf16, #tpu.memory_space<vmem>>, vector<1x128x128xbf16>
    %33 = vector.shape_cast %32 : vector<1x128x128xbf16> to vector<128x128xbf16>
    %cst_25 = arith.constant dense<0.000000e+00> : vector<32x128xf32>
    %34 = tpu.matmul %31, %33, %cst_25 {dimension_numbers = #tpu.dot_dimension_numbers<[1], [0], [0], [1], [0, 0, 1, 1], [], []>} : vector<32x128xbf16>, vector<128x128xbf16>, vector<32x128xf32> -> vector<32x128xf32>
    %c2_26 = arith.constant 2 : index
    %c0_27 = arith.constant 0 : index
    %c0_28 = arith.constant 0 : index
    %35 = vector.load %arg6[%c2_26, %c0_27, %c0_28] : memref<3x1x128xf32, #tpu.memory_space<vmem>>, vector<1x1x128xf32>
    %36 = vector.shape_cast %35 : vector<1x1x128xf32> to vector<1x128xf32>
    %37 = vector.broadcast %36 : vector<1x128xf32> to vector<32x128xf32>
    %38 = arith.addf %34, %37 : vector<32x128xf32>
    %39 = arith.truncf %38 : vector<32x128xf32> to vector<32x128xbf16>
    %c0_29 = arith.constant 0 : index
    %c0_30 = arith.constant 0 : index
    %40 = vector.load %arg7[%c0_29, %c0_30] : memref<32x128xbf16, #tpu.memory_space<vmem>>, vector<32x128xbf16>
    tpu.vector_store %arg7[%c0_29, %c0_30], %39 {strides = array<i32>} : memref<32x128xbf16, #tpu.memory_space<vmem>>, vector<32x128xbf16>,
    return
  }
  func.func @transform_0(%arg0: i32) -> (i32, i32) {
    %c0_i32 = arith.constant 0 : i32
    %c0_i32_0 = arith.constant 0 : i32
    return %arg0, %c0_i32 : i32, i32
  }
  func.func @transform_1(%arg0: i32) -> (i32, i32) {
    %c0_i32 = arith.constant 0 : i32
    %c0_i32_0 = arith.constant 0 : i32
    return %arg0, %c0_i32 : i32, i32
  }
  func.func @transform_2(%arg0: i32) -> (i32, i32) {
    %c0_i32 = arith.constant 0 : i32
    %c0_i32_0 = arith.constant 0 : i32
    %c0_i32_1 = arith.constant 0 : i32
    return %c0_i32, %c0_i32_0 : i32, i32
  }
  func.func @transform_3(%arg0: i32) -> (i32, i32) {
    %c0_i32 = arith.constant 0 : i32
    %c0_i32_0 = arith.constant 0 : i32
    %c0_i32_1 = arith.constant 0 : i32
    return %c0_i32, %c0_i32_0 : i32, i32
  }
  func.func @transform_4(%arg0: i32) -> (i32, i32, i32) {
    %c0_i32 = arith.constant 0 : i32
    %c0_i32_0 = arith.constant 0 : i32
    %c0_i32_1 = arith.constant 0 : i32
    %c0_i32_2 = arith.constant 0 : i32
    return %c0_i32, %c0_i32_0, %c0_i32_1 : i32, i32, i32
  }
  func.func @transform_5(%arg0: i32) -> (i32, i32, i32) {
    %c0_i32 = arith.constant 0 : i32
    %c0_i32_0 = arith.constant 0 : i32
    %c0_i32_1 = arith.constant 0 : i32
    %c0_i32_2 = arith.constant 0 : i32
    return %c0_i32, %c0_i32_0, %c0_i32_1 : i32, i32, i32
  }
  func.func @transform_6(%arg0: i32) -> (i32, i32) {
    %c0_i32 = arith.constant 0 : i32
    %c0_i32_0 = arith.constant 0 : i32
    return %arg0, %c0_i32 : i32, i32
  }
}

</mosaic_0001>

<llo_original>
// kernel: tpu_custom_call.1
$region0: #{tpu_custom_call.1}
  #allocation0 [shape = 'u32[]', space=smem, size = 0x4, offset = 0x4, fixed_abs, tag = 'smem constant byte address 0x4 - core index']
  #allocation1 [shape = 'u32[72,128]{1,0:T(1,128)}', space=vmem, size = 0x9000, scoped, tag = 'internal scratch']
  %s0 = inlined_call_operand.hbm [shape: bf16[64,128], index: 0, kind: input, shape index: {}]
  %s1 = inlined_call_operand.hbm [shape: bf16[64,128], index: 1, kind: input, shape index: {}]
  %s2 = inlined_call_operand.hbm [shape: bf16[128,128], index: 2, kind: input, shape index: {}]
  %s3 = inlined_call_operand.vmem [shape: f32[1,128], index: 3, kind: input, shape index: {}]
  %s4 = inlined_call_operand.hbm [shape: bf16[3,128,128], index: 4, kind: input, shape index: {}]
  %s5 = inlined_call_operand.vmem [shape: f32[3,1,128], index: 5, kind: input, shape index: {}]
  %s6 = inlined_call_operand.hbm [shape: bf16[64,128], index: 6, kind: output, shape index: {}]
  %s7 = sld [smem:[#allocation0]]
  $region73: #{tpu_custom_call.1} parent=0
    _
  %s9 = ssub.s32 1, %s7
  %s10 = scalar_select 0, %s9, %s7
  $region1: #{tpu_custom_call.1} parent=0
    #allocation2 [shape = 'u8[16384]{0}', space=vmem, size = 0x4000, scoped, tag = 'input window, operand 0']
    #allocation3 [shape = 's32[2]{0}', space=sflag, size = 0x8, scoped, tag = 'scoped memory for tpu_custom_call.1']
    #allocation4 [shape = 's32[2]{0}', space=sflag, size = 0x8, scoped, tag = 'scoped memory for tpu_custom_call.1']
    #allocation5 [shape = 'u8[16384]{0}', space=vmem, size = 0x4000, scoped, tag = 'input window, operand 1']
    #allocation6 [shape = 's32[2]{0}', space=sflag, size = 0x8, scoped, tag = 'scoped memory for tpu_custom_call.1']
    #allocation7 [shape = 'u8[32768]{0}', space=vmem, size = 0x8000, scoped, tag = 'input window, operand 2, single buffered']
    #allocation8 [shape = 'u8[98304]{0}', space=vmem, size = 0x18000, scoped, tag = 'input window, operand 4, single buffered']
    #allocation9 [shape = 's32[1]{0}', space=sflag, size = 0x4, scoped, tag = 'scoped memory for tpu_custom_call.1']
    #allocation10 [shape = 'u8[16384]{0}', space=vmem, size = 0x4000, scoped, tag = 'output window, operand 0']
    %11 = vsyncpa [#allocation3], 0
    %s12 = scalar_lea.sflag [#allocation3], 1
    %13 = vsyncpa %s12, 0
    %14 = vsyncpa [#allocation6], 0
    %s15 = scalar_lea.sflag [#allocation6], 1
    %16 = vsyncpa %s15, 0
    %17 = vsyncpa [#allocation9], 0
    %18 = vsyncpa [#allocation4], 0
    %s19 = scalar_lea.sflag [#allocation4], 1
    %20 = vsyncpa %s19, 0
    loop: start=0, step=1, limit=4
    $region2: #{tpu_custom_call.1} parent=1 // loop_pre_header
      _
    $region3: #{tpu_custom_call.1} parent=1 // loop_header
      %s22 = sphi 0, %s26
      %p23 = scmp.ge.s32.totalorder %s22, 4
      %s32 = sphi 0, %s34
      %s35 = sphi 0, %s32
      %s36 = sphi 0, %s35
      %s52 = sphi 0, %s36
      %s58 = sphi 0, %s60
      %s61 = sphi 0, %s58
      %s62 = sphi 0, %s61
      %s78 = sphi 0, %s62
      %s82 = sphi 0, %s82
      %s84 = sphi 0, %s82
      %s85 = sphi 0, %s84
      %s99 = sphi 0, %s85
      %s103 = sphi 0, %s103
      %s105 = sphi 0, %s103
      %s106 = sphi 0, %s105
      %s120 = sphi 0, %s106
      %s124 = sphi 0, %s124
      %s126 = sphi 0, %s124
      %s127 = sphi 0, %s126
      %s141 = sphi 0, %s127
      %s145 = sphi 0, %s145
      %s147 = sphi 0, %s145
      %s148 = sphi 0, %s147
      %s162 = sphi 0, %s148
      %s168 = sphi 0, %s170
      %s171 = sphi 0, %s168
      %s172 = sphi 0, %s171
      %s188 = sphi 0, %s172
    $region4: #{tpu_custom_call.1} parent=1 // loop_header_branch
      %25 = sbr.rel (%p23) target = $region8
    $region5: #{tpu_custom_call.1} parent=1 // loop_body
      %s27 = ssub.s32 %s22, 1
      %s28 = ssub.s32 %s22, 2
      %s29 = sadd.s32 %s22, 1
      %s30 = ssub.s32 %s22, %s29
      %p31 = scmp.eq.s32.totalorder %s30, 0
      %s33 = sadd.s32 %s32, 1
      %s34 = scalar_select %p31, %s32, %s33
      %p37 = pneg %p31
      %p38 = scmp.eq.s32.totalorder %s22, 1
      %p39 = por %p37, %p38
      %p40 = scmp.ne.s32.totalorder %s32, %s35
      %p41 = scmp.eq.s32.totalorder %s22, 0
      %p42 = por %p40, %p41
      %p43 = scmp.ne.s32.totalorder %s32, %s35
      %p44 = scmp.eq.s32.totalorder %s27, 1
      %p45 = por %p43, %p44
      %p46 = scmp.ne.s32.totalorder %s35, %s36
      %p47 = scmp.eq.s32.totalorder %s27, 0
      %p48 = por %p46, %p47
      %p49 = scmp.ne.s32.totalorder %s35, %s36
      %p50 = scmp.eq.s32.totalorder %s28, 1
      %p51 = por %p49, %p50
      %p53 = scmp.ne.s32.totalorder %s36, %s52
      %p54 = scmp.eq.s32.totalorder %s28, 0
      %p55 = por %p53, %p54
      %s56 = ssub.s32 %s22, %s29
      %p57 = scmp.eq.s32.totalorder %s56, 0
      %s59 = sadd.s32 %s58, 1
      %s60 = scalar_select %p57, %s58, %s59
      %p63 = pneg %p57
      %p64 = scmp.eq.s32.totalorder %s22, 1
      %p65 = por %p63, %p64
      %p66 = scmp.ne.s32.totalorder %s58, %s61
      %p67 = scmp.eq.s32.totalorder %s22, 0
      %p68 = por %p66, %p67
      %p69 = scmp.ne.s32.totalorder %s58, %s61
      %p70 = scmp.eq.s32.totalorder %s27, 1
      %p71 = por %p69, %p70
      %p72 = scmp.ne.s32.totalorder %s61, %s62
      %p73 = scmp.eq.s32.totalorder %s27, 0
      %p74 = por %p72, %p73
      %p75 = scmp.ne.s32.totalorder %s61, %s62
      %p76 = scmp.eq.s32.totalorder %s28, 1
      %p77 = por %p75, %p76
      %p79 = scmp.ne.s32.totalorder %s62, %s78
      %p80 = scmp.eq.s32.totalorder %s28, 0
      %p81 = por %p79, %p80
      %s83 = sadd.s32 %s82, 1
      %p86 = scmp.eq.s32.totalorder %s22, 1
      %p87 = scmp.ne.s32.totalorder %s82, %s84
      %p88 = scmp.eq.s32.totalorder %s22, 0
      %p89 = por %p87, %p88
      %p90 = scmp.ne.s32.totalorder %s82, %s84
      %p91 = scmp.eq.s32.totalorder %s27, 1
      %p92 = por %p90, %p91
      %p93 = scmp.ne.s32.totalorder %s84, %s85
      %p94 = scmp.eq.s32.totalorder %s27, 0
      %p95 = por %p93, %p94
      %p96 = scmp.ne.s32.totalorder %s84, %s85
      %p97 = scmp.eq.s32.totalorder %s28, 1
      %p98 = por %p96, %p97
      %p100 = scmp.ne.s32.totalorder %s85, %s99
      %p101 = scmp.eq.s32.totalorder %s28, 0
      %p102 = por %p100, %p101
      %s104 = sadd.s32 %s103, 1
      %p107 = scmp.eq.s32.totalorder %s22, 1
      %p108 = scmp.ne.s32.totalorder %s103, %s105
      %p109 = scmp.eq.s32.totalorder %s22, 0
      %p110 = por %p108, %p109
      %p111 = scmp.ne.s32.totalorder %s103, %s105
      %p112 = scmp.eq.s32.totalorder %s27, 1
      %p113 = por %p111, %p112
      %p114 = scmp.ne.s32.totalorder %s105, %s106
      %p115 = scmp.eq.s32.totalorder %s27, 0
      %p116 = por %p114, %p115
      %p117 = scmp.ne.s32.totalorder %s105, %s106
      %p118 = scmp.eq.s32.totalorder %s28, 1
      %p119 = por %p117, %p118
      %p121 = scmp.ne.s32.totalorder %s106, %s120
      %p122 = scmp.eq.s32.totalorder %s28, 0
      %p123 = por %p121, %p122
      %s125 = sadd.s32 %s124, 1
      %p128 = scmp.eq.s32.totalorder %s22, 1
      %p129 = scmp.ne.s32.totalorder %s124, %s126
      %p130 = scmp.eq.s32.totalorder %s22, 0
      %p131 = por %p129, %p130
      %p132 = scmp.ne.s32.totalorder %s124, %s126
      %p133 = scmp.eq.s32.totalorder %s27, 1
      %p134 = por %p132, %p133
      %p135 = scmp.ne.s32.totalorder %s126, %s127
      %p136 = scmp.eq.s32.totalorder %s27, 0
      %p137 = por %p135, %p136
      %p138 = scmp.ne.s32.totalorder %s126, %s127
      %p139 = scmp.eq.s32.totalorder %s28, 1
      %p140 = por %p138, %p139
      %p142 = scmp.ne.s32.totalorder %s127, %s141
      %p143 = scmp.eq.s32.totalorder %s28, 0
      %p144 = por %p142, %p143
      %s146 = sadd.s32 %s145, 1
      %p149 = scmp.eq.s32.totalorder %s22, 1
      %p150 = scmp.ne.s32.totalorder %s145, %s147
      %p151 = scmp.eq.s32.totalorder %s22, 0
      %p152 = por %p150, %p151
      %p153 = scmp.ne.s32.totalorder %s145, %s147
      %p154 = scmp.eq.s32.totalorder %s27, 1
      %p155 = por %p153, %p154
      %p156 = scmp.ne.s32.totalorder %s147, %s148
      %p157 = scmp.eq.s32.totalorder %s27, 0
      %p158 = por %p156, %p157
      %p159 = scmp.ne.s32.totalorder %s147, %s148
      %p160 = scmp.eq.s32.totalorder %s28, 1
      %p161 = por %p159, %p160
      %p163 = scmp.ne.s32.totalorder %s148, %s162
      %p164 = scmp.eq.s32.totalorder %s28, 0
      %p165 = por %p163, %p164
      %s166 = ssub.s32 %s22, %s29
      %p167 = scmp.eq.s32.totalorder %s166, 0
      %s169 = sadd.s32 %s168, 1
      %s170 = scalar_select %p167, %s168, %s169
      %p173 = pneg %p167
      %p174 = scmp.eq.s32.totalorder %s22, 1
      %p175 = por %p173, %p174
      %p176 = scmp.ne.s32.totalorder %s168, %s171
      %p177 = scmp.eq.s32.totalorder %s22, 0
      %p178 = por %p176, %p177
      %p179 = scmp.ne.s32.totalorder %s168, %s171
      %p180 = scmp.eq.s32.totalorder %s27, 1
      %p181 = por %p179, %p180
      %p182 = scmp.ne.s32.totalorder %s171, %s172
      %p183 = scmp.eq.s32.totalorder %s27, 0
      %p184 = por %p182, %p183
      %p185 = scmp.ne.s32.totalorder %s171, %s172
      %p186 = scmp.eq.s32.totalorder %s28, 1
      %p187 = por %p185, %p186
      %p189 = scmp.ne.s32.totalorder %s172, %s188
      %p190 = scmp.eq.s32.totalorder %s28, 0
      %p191 = por %p189, %p190
      %p192 = scmp.le.s32.totalorder 1, %s22
      %p193 = scmp.lt.s32.totalorder %s22, 3
      %p194 = pnand %p192, %p193
      %p195 = pneg %p194
      // Predicated region
      $region9: #{tpu_custom_call.1} parent=5 // pred_check
        _
      $region10: #{tpu_custom_call.1} parent=5 // pred_check_branch
        %197 = sbr.rel (%p194) target = $region12
      $region11: #{tpu_custom_call.1} parent=5 // pred_region
        %s198 = ssub.s32 %s22, 1
        // Predicated region
        $region13: #{tpu_custom_call.1} parent=11 // pred_check
          %p199 = pneg %p95
        $region14: #{tpu_custom_call.1} parent=11 // pred_check_branch
          %201 = sbr.rel (%p199) target = $region16
        $region15: #{tpu_custom_call.1} parent=11 // pred_region
          %203 = vsyncadd [#allocation6], 0
          %s204 = sshll.u32 %s2, 4
          %s205 = int_to_ptr.hbm [resolvable:$true] %s204
          %s206 = sshll.u32 [#allocation7], 4
          %s207 = int_to_ptr.vmem [resolvable:$true] %s206
          %212 = dma.hbm_to_vmem [thread:$0]  %s205, 1024, %s207, [#allocation6], 64, 64, 4
        $region16: #{tpu_custom_call.1} parent=11 // pred_fallthru
          _
        // Predicated region
        $region17: #{tpu_custom_call.1} parent=11 // pred_check
          %p213 = pneg %p116
        $region18: #{tpu_custom_call.1} parent=11 // pred_check_branch
          %215 = sbr.rel (%p213) target = $region20
        $region19: #{tpu_custom_call.1} parent=11 // pred_region
          _
        $region20: #{tpu_custom_call.1} parent=11 // pred_fallthru
          _
        // Predicated region
        $region21: #{tpu_custom_call.1} parent=11 // pred_check
          %p216 = pneg %p137
        $region22: #{tpu_custom_call.1} parent=11 // pred_check_branch
          %218 = sbr.rel (%p216) target = $region24
        $region23: #{tpu_custom_call.1} parent=11 // pred_region
          %220 = vsyncadd [#allocation9], 0
          %s221 = sshll.u32 %s4, 4
          %s222 = int_to_ptr.hbm [resolvable:$true] %s221
          %s223 = sshll.u32 [#allocation8], 4
          %s224 = int_to_ptr.vmem [resolvable:$true] %s223
          %229 = dma.hbm_to_vmem [thread:$0]  %s222, 3072, %s224, [#allocation9], 64, 64, 4
        $region24: #{tpu_custom_call.1} parent=11 // pred_fallthru
          _
        // Predicated region
        $region25: #{tpu_custom_call.1} parent=11 // pred_check
          %p230 = pneg %p158
        $region26: #{tpu_custom_call.1} parent=11 // pred_check_branch
          %232 = sbr.rel (%p230) target = $region28
        $region27: #{tpu_custom_call.1} parent=11 // pred_region
          _
        $region28: #{tpu_custom_call.1} parent=11 // pred_fallthru
          _
      $region12: #{tpu_custom_call.1} parent=5 // pred_fallthru
        _
      %p233 = scmp.lt.s32.totalorder %s22, 2
      // Predicated region
      $region29: #{tpu_custom_call.1} parent=5 // pred_check
        %p234 = pneg %p233
      $region30: #{tpu_custom_call.1} parent=5 // pred_check_branch
        %236 = sbr.rel (%p234) target = $region32
      $region31: #{tpu_custom_call.1} parent=5 // pred_region
        // Predicated region
        $region33: #{tpu_custom_call.1} parent=31 // pred_check
          %p237 = pneg %p42
        $region34: #{tpu_custom_call.1} parent=31 // pred_check_branch
          %239 = sbr.rel (%p237) target = $region36
        $region35: #{tpu_custom_call.1} parent=31 // pred_region
          %s240 = sand.u32 %s32, 1
          %s241 = scalar_lea.sflag [#allocation3], %s240
          %s242 = sand.u32 %s32, 1
          %s243 = smul.addr %s242, 16
          %s244 = scalar_lea.vmem [#allocation2], %s243
          %s245 = smul.u32 4, %s22
          %247 = vsyncadd %s241, 0
          %s248 = smul.addr %s245, 4
          %s249 = scalar_lea.hbm %s0, %s248
          %s250 = sshll.u32 %s249, 4
          %s251 = int_to_ptr.hbm [resolvable:$true] %s250
          %s252 = sshll.u32 %s244, 4
          %s253 = int_to_ptr.vmem [resolvable:$true] %s252
          %258 = dma.hbm_to_vmem [thread:$0]  %s251, 256, %s253, %s241, 64, 64, 4
        $region36: #{tpu_custom_call.1} parent=31 // pred_fallthru
          _
        // Predicated region
        $region37: #{tpu_custom_call.1} parent=31 // pred_check
          %p259 = pneg %p68
        $region38: #{tpu_custom_call.1} parent=31 // pred_check_branch
          %261 = sbr.rel (%p259) target = $region40
        $region39: #{tpu_custom_call.1} parent=31 // pred_region
          %s262 = sand.u32 %s22, 1
          %s263 = scalar_lea.sflag [#allocation6], %s262
          %s264 = sand.u32 %s58, 1
          %s265 = smul.addr %s264, 16
          %s266 = scalar_lea.vmem [#allocation5], %s265
          %s267 = smul.u32 4, %s22
          %269 = vsyncadd %s263, 0
          %s270 = smul.addr %s267, 4
          %s271 = scalar_lea.hbm %s1, %s270
          %s272 = sshll.u32 %s271, 4
          %s273 = int_to_ptr.hbm [resolvable:$true] %s272
          %s274 = sshll.u32 %s266, 4
          %s275 = int_to_ptr.vmem [resolvable:$true] %s274
          %280 = dma.hbm_to_vmem [thread:$0]  %s273, 256, %s275, %s263, 64, 64, 4
        $region40: #{tpu_custom_call.1} parent=31 // pred_fallthru
          _
      $region32: #{tpu_custom_call.1} parent=5 // pred_fallthru
        _
      %p281 = scmp.le.s32.totalorder 1, %s22
      %p282 = scmp.lt.s32.totalorder %s22, 3
      %p283 = pnand %p281, %p282
      %p284 = pneg %p283
      // Predicated region
      $region41: #{tpu_custom_call.1} parent=5 // pred_check
        _
      $region42: #{tpu_custom_call.1} parent=5 // pred_check_branch
        %286 = sbr.rel (%p283) target = $region44
      $region43: #{tpu_custom_call.1} parent=5 // pred_region
        %s287 = ssub.s32 %s22, 1
        %s288 = sand.u32 %s35, 1
        %s289 = scalar_lea.sflag [#allocation3], %s288
        %s290 = sand.u32 %s35, 1
        %s291 = smul.addr %s290, 16
        %s292 = scalar_lea.vmem [#allocation2], %s291
        // Predicated region
        $region45: #{tpu_custom_call.1} parent=43 // pred_check
          %p293 = pneg %p48
        $region46: #{tpu_custom_call.1} parent=43 // pred_check_branch
          %295 = sbr.rel (%p293) target = $region48
        $region47: #{tpu_custom_call.1} parent=43 // pred_region
          %297 = dma.done %s289, 256
        $region48: #{tpu_custom_call.1} parent=43 // pred_fallthru
          _
        %s298 = sand.u32 %s27, 1
        %s299 = scalar_lea.sflag [#allocation6], %s298
        %s300 = sand.u32 %s61, 1
        %s301 = smul.addr %s300, 16
        %s302 = scalar_lea.vmem [#allocation5], %s301
        // Predicated region
        $region49: #{tpu_custom_call.1} parent=43 // pred_check
          %p303 = pneg %p74
        $region50: #{tpu_custom_call.1} parent=43 // pred_check_branch
          %305 = sbr.rel (%p303) target = $region52
        $region51: #{tpu_custom_call.1} parent=43 // pred_region
          %307 = dma.done %s299, 256
        $region52: #{tpu_custom_call.1} parent=43 // pred_fallthru
          _
        // Predicated region
        $region53: #{tpu_custom_call.1} parent=43 // pred_check
          %p308 = pneg %p95
        $region54: #{tpu_custom_call.1} parent=43 // pred_check_branch
          %310 = sbr.rel (%p308) target = $region56
        $region55: #{tpu_custom_call.1} parent=43 // pred_region
          %312 = dma.done [#allocation6], 1024
        $region56: #{tpu_custom_call.1} parent=43 // pred_fallthru
          _
        // Predicated region
        $region57: #{tpu_custom_call.1} parent=43 // pred_check
          %p313 = pneg %p137
        $region58: #{tpu_custom_call.1} parent=43 // pred_check_branch
          %315 = sbr.rel (%p313) target = $region60
        $region59: #{tpu_custom_call.1} parent=43 // pred_region
          %317 = dma.done [#allocation9], 3072
        $region60: #{tpu_custom_call.1} parent=43 // pred_fallthru
          _
        %s318 = sand.u32 %s35, 1
        %s319 = scalar_lea.sflag [#allocation3], %s318
        %s320 = sand.u32 %s35, 1
        %s321 = smul.addr %s320, 16
        %s322 = scalar_lea.vmem [#allocation2], %s321
        %p323 = pneg %p48
        %p324 = pneg %p45
        %s325 = sand.u32 %s27, 1
        %s326 = scalar_lea.sflag [#allocation6], %s325
        %s327 = sand.u32 %s61, 1
        %s328 = smul.addr %s327, 16
        %s329 = scalar_lea.vmem [#allocation5], %s328
        %p330 = pneg %p74
        %p331 = pneg %p71
        %p332 = pneg %p95
        %p333 = pneg %p92
        %p334 = pneg %p116
        %p335 = pneg %p113
        %p336 = pneg %p137
        %p337 = pneg %p134
        %p338 = pneg %p158
        %p339 = pneg %p155
        %p340 = pneg %p184
        %p341 = pneg %p181
        %s342 = sand.u32 %s171, 1
        %s343 = scalar_lea.sflag [#allocation4], %s342
        %s344 = sand.u32 %s171, 1
        %s345 = smul.addr %s344, 16
        %s346 = scalar_lea.vmem [#allocation10], %s345
        %s347 = smul.u32 4, %s27
        %s348 = smul.u32 4, %s27
        %s349 = smul.u32 4, %s27
        %v350 = vld [vmem:[%s292] sm:$0xf]
        %v351 = vld [vmem:[%s292 + $0x4] sm:$0xf]
        %v352 = vld [vmem:[%s292 + $0x8] sm:$0xf]
        %v353 = vld [vmem:[%s292 + $0xc] sm:$0xf]
        %v354 = vld [vmem:[#allocation7] sm:$0xf]
        %v355 = vld [vmem:[#allocation7 + $0x4] sm:$0xf]
        %v356 = vld [vmem:[#allocation7 + $0x8] sm:$0xf]
        %v357 = vld [vmem:[#allocation7 + $0xc] sm:$0xf]
        %v358 = vld [vmem:[#allocation7 + $0x10] sm:$0xf]
        %v359 = vld [vmem:[#allocation7 + $0x14] sm:$0xf]
        %v360 = vld [vmem:[#allocation7 + $0x18] sm:$0xf]
        %v361 = vld [vmem:[#allocation7 + $0x1c] sm:$0xf]
        %v362 = vld [vmem:[#allocation7 + $0x20] sm:$0xf]
        %v363 = vld [vmem:[#allocation7 + $0x24] sm:$0xf]
        %v364 = vld [vmem:[#allocation7 + $0x28] sm:$0xf]
        %v365 = vld [vmem:[#allocation7 + $0x2c] sm:$0xf]
        %v366 = vld [vmem:[#allocation7 + $0x30] sm:$0xf]
        %v367 = vld [vmem:[#allocation7 + $0x34] sm:$0xf]
        %v368 = vld [vmem:[#allocation7 + $0x38] sm:$0xf]
        %v369 = vld [vmem:[#allocation7 + $0x3c] sm:$0xf]
        %v370 = vld [vmem:[%s302] sm:$0xf]
        %v371 = vld [vmem:[%s302 + $0x4] sm:$0xf]
        %v372 = vld [vmem:[%s302 + $0x8] sm:$0xf]
        %v373 = vld [vmem:[%s302 + $0xc] sm:$0xf]
        %v374 = vunpack.c.l.bf16 %v370
        %v375 = vunpack.c.l.bf16 %v371
        %v376 = vunpack.c.l.bf16 %v372
        %v377 = vunpack.c.l.bf16 %v373
        %v382 = vunpack.c.l.b16 %v350
        %v383 = vunpack.c.l.b16 %v351
        %v384 = vunpack.c.l.b16 %v352
        %v385 = vunpack.c.l.b16 %v353
        %v386 = vpack.c.b16 %v383, %v382
        %v387 = vpack.c.b16 %v385, %v384
        %v406 = vunpack.c.l.b16 %v354
        %v407 = vunpack.c.l.b16 %v355
        %v408 = vunpack.c.l.b16 %v356
        %v409 = vunpack.c.l.b16 %v357
        %v410 = vunpack.c.l.b16 %v358
        %v411 = vunpack.c.l.b16 %v359
        %v412 = vunpack.c.l.b16 %v360
        %v413 = vunpack.c.l.b16 %v361
        %v414 = vunpack.c.l.b16 %v362
        %v415 = vunpack.c.l.b16 %v363
        %v416 = vunpack.c.l.b16 %v364
        %v417 = vunpack.c.l.b16 %v365
        %v418 = vunpack.c.l.b16 %v366
        %v419 = vunpack.c.l.b16 %v367
        %v420 = vunpack.c.l.b16 %v368
        %v421 = vunpack.c.l.b16 %v369
        %v422 = vpack.c.b16 %v407, %v406
        %v423 = vpack.c.b16 %v409, %v408
        %v424 = vpack.c.b16 %v411, %v410
        %v425 = vpack.c.b16 %v413, %v412
        %v426 = vpack.c.b16 %v415, %v414
        %v427 = vpack.c.b16 %v417, %v416
        %v428 = vpack.c.b16 %v419, %v418
        %v429 = vpack.c.b16 %v421, %v420
        %438 = vmatpush.bf16.msra.mxu0 %v429
        %439 = vmatpush.bf16.msra.mxu0 %v428
        %440 = vmatpush.bf16.msra.mxu0 %v427
        %441 = vmatpush.bf16.msra.mxu0 %v426
        %442 = vmatpush.bf16.msra.mxu0 %v425
        %443 = vmatpush.bf16.msra.mxu0 %v424
        %444 = vmatpush.bf16.msra.mxu0 %v423
        %445 = vmatpush.bf16.msra.mxu0 %v422
        %446 = vmatmul.bf16.gmra.mxu0 %v386
        %v447 = vpop.f32.mrf.mxu0
        %v448 = vadd.f32 %v374, %v447
        %v449 = vpop.f32.mrf.mxu0
        %v450 = vadd.f32 %v375, %v449
        %451 = vmatmul.bf16.gmra.mxu0 %v387
        %v452 = vpop.f32.mrf.mxu0
        %v453 = vadd.f32 %v376, %v452
        %v454 = vpop.f32.mrf.mxu0
        %v455 = vadd.f32 %v377, %v454
        %456 = vdwg.mxu0
        %v457 = vld [vmem:[%s3] sm:$0x1]
        %v459 = vperm.slane %v457, 0
        %v461 = vadd.f32 %v448, %v459
        %v462 = vadd.f32 %v450, %v459
        %v463 = vadd.f32 %v453, %v459
        %v464 = vadd.f32 %v455, %v459
        %v465 = vmax.f32 %v461, 0.0
        %v466 = vmax.f32 %v462, 0.0
        %v467 = vmax.f32 %v463, 0.0
        %v468 = vmax.f32 %v464, 0.0
        %v469 = vpack.c.bf16 %v466, %v465
        %v470 = vpack.c.bf16 %v468, %v467
        %v471 = vld [vmem:[#allocation8] sm:$0xf]
        %v472 = vld [vmem:[#allocation8 + $0x4] sm:$0xf]
        %v473 = vld [vmem:[#allocation8 + $0x8] sm:$0xf]
        %v474 = vld [vmem:[#allocation8 + $0xc] sm:$0xf]
        %v475 = vld [vmem:[#allocation8 + $0x10] sm:$0xf]
        %v476 = vld [vmem:[#allocation8 + $0x14] sm:$0xf]
        %v477 = vld [vmem:[#allocation8 + $0x18] sm:$0xf]
        %v478 = vld [vmem:[#allocation8 + $0x1c] sm:$0xf]
        %v479 = vld [vmem:[#allocation8 + $0x20] sm:$0xf]
        %v480 = vld [vmem:[#allocation8 + $0x24] sm:$0xf]
        %v481 = vld [vmem:[#allocation8 + $0x28] sm:$0xf]
        %v482 = vld [vmem:[#allocation8 + $0x2c] sm:$0xf]
        %v483 = vld [vmem:[#allocation8 + $0x30] sm:$0xf]
        %v484 = vld [vmem:[#allocation8 + $0x34] sm:$0xf]
        %v485 = vld [vmem:[#allocation8 + $0x38] sm:$0xf]
        %v486 = vld [vmem:[#allocation8 + $0x3c] sm:$0xf]
        %v487 = vld [vmem:[%s5] sm:$0x1]
        %v489 = vperm.slane %v487, 0
        %v507 = vunpack.c.l.b16 %v471
        %v508 = vunpack.c.l.b16 %v472
        %v509 = vunpack.c.l.b16 %v473
        %v510 = vunpack.c.l.b16 %v474
        %v511 = vunpack.c.l.b16 %v475
        %v512 = vunpack.c.l.b16 %v476
        %v513 = vunpack.c.l.b16 %v477
        %v514 = vunpack.c.l.b16 %v478
        %v515 = vunpack.c.l.b16 %v479
        %v516 = vunpack.c.l.b16 %v480
        %v517 = vunpack.c.l.b16 %v481
        %v518 = vunpack.c.l.b16 %v482
        %v519 = vunpack.c.l.b16 %v483
        %v520 = vunpack.c.l.b16 %v484
        %v521 = vunpack.c.l.b16 %v485
        %v522 = vunpack.c.l.b16 %v486
        %v523 = vpack.c.b16 %v508, %v507
        %v524 = vpack.c.b16 %v510, %v509
        %v525 = vpack.c.b16 %v512, %v511
        %v526 = vpack.c.b16 %v514, %v513
        %v527 = vpack.c.b16 %v516, %v515
        %v528 = vpack.c.b16 %v518, %v517
        %v529 = vpack.c.b16 %v520, %v519
        %v530 = vpack.c.b16 %v522, %v521
        %539 = vmatpush.bf16.msra.mxu0 %v530
        %540 = vmatpush.bf16.msra.mxu0 %v529
        %541 = vmatpush.bf16.msra.mxu0 %v528
        %542 = vmatpush.bf16.msra.mxu0 %v527
        %543 = vmatpush.bf16.msra.mxu0 %v526
        %544 = vmatpush.bf16.msra.mxu0 %v525
        %545 = vmatpush.bf16.msra.mxu0 %v524
        %546 = vmatpush.bf16.msra.mxu0 %v523
        %547 = vmatmul.bf16.gmra.mxu0 %v469
        %v548 = vpop.f32.mrf.mxu0
        %v549 = vadd.f32 %v489, %v548
        %v550 = vpop.f32.mrf.mxu0
        %v551 = vadd.f32 %v489, %v550
        %552 = vmatmul.bf16.gmra.mxu0 %v470
        %v553 = vpop.f32.mrf.mxu0
        %v554 = vadd.f32 %v489, %v553
        %v555 = vpop.f32.mrf.mxu0
        %v556 = vadd.f32 %v489, %v555
        %557 = vdwg.mxu0
        %v558 = vmax.f32 %v549, 0.0
        %v559 = vmax.f32 %v551, 0.0
        %v560 = vmax.f32 %v554, 0.0
        %v561 = vmax.f32 %v556, 0.0
        %v562 = vpack.c.bf16 %v559, %v558
        %v563 = vpack.c.bf16 %v561, %v560
        %s564 = scalar_lea.vmem [#allocation8], 64
        %v565 = vld [vmem:[%s564] sm:$0xf]
        %v566 = vld [vmem:[%s564 + $0x4] sm:$0xf]
        %v567 = vld [vmem:[%s564 + $0x8] sm:$0xf]
        %v568 = vld [vmem:[%s564 + $0xc] sm:$0xf]
        %v569 = vld [vmem:[%s564 + $0x10] sm:$0xf]
        %v570 = vld [vmem:[%s564 + $0x14] sm:$0xf]
        %v571 = vld [vmem:[%s564 + $0x18] sm:$0xf]
        %v572 = vld [vmem:[%s564 + $0x1c] sm:$0xf]
        %v573 = vld [vmem:[%s564 + $0x20] sm:$0xf]
        %v574 = vld [vmem:[%s564 + $0x24] sm:$0xf]
        %v575 = vld [vmem:[%s564 + $0x28] sm:$0xf]
        %v576 = vld [vmem:[%s564 + $0x2c] sm:$0xf]
        %v577 = vld [vmem:[%s564 + $0x30] sm:$0xf]
        %v578 = vld [vmem:[%s564 + $0x34] sm:$0xf]
        %v579 = vld [vmem:[%s564 + $0x38] sm:$0xf]
        %v580 = vld [vmem:[%s564 + $0x3c] sm:$0xf]
        %s581 = scalar_lea.vmem %s5, 1
        %v582 = vld [vmem:[%s581] sm:$0x1]
        %v584 = vperm.slane %v582, 0
        %v602 = vunpack.c.l.b16 %v565
        %v603 = vunpack.c.l.b16 %v566
        %v604 = vunpack.c.l.b16 %v567
        %v605 = vunpack.c.l.b16 %v568
        %v606 = vunpack.c.l.b16 %v569
        %v607 = vunpack.c.l.b16 %v570
        %v608 = vunpack.c.l.b16 %v571
        %v609 = vunpack.c.l.b16 %v572
        %v610 = vunpack.c.l.b16 %v573
        %v611 = vunpack.c.l.b16 %v574
        %v612 = vunpack.c.l.b16 %v575
        %v613 = vunpack.c.l.b16 %v576
        %v614 = vunpack.c.l.b16 %v577
        %v615 = vunpack.c.l.b16 %v578
        %v616 = vunpack.c.l.b16 %v579
        %v617 = vunpack.c.l.b16 %v580
        %v618 = vpack.c.b16 %v603, %v602
        %v619 = vpack.c.b16 %v605, %v604
        %v620 = vpack.c.b16 %v607, %v606
        %v621 = vpack.c.b16 %v609, %v608
        %v622 = vpack.c.b16 %v611, %v610
        %v623 = vpack.c.b16 %v613, %v612
        %v624 = vpack.c.b16 %v615, %v614
        %v625 = vpack.c.b16 %v617, %v616
        %634 = vmatpush.bf16.msra.mxu0 %v625
        %635 = vmatpush.bf16.msra.mxu0 %v624
        %636 = vmatpush.bf16.msra.mxu0 %v623
        %637 = vmatpush.bf16.msra.mxu0 %v622
        %638 = vmatpush.bf16.msra.mxu0 %v621
        %639 = vmatpush.bf16.msra.mxu0 %v620
        %640 = vmatpush.bf16.msra.mxu0 %v619
        %641 = vmatpush.bf16.msra.mxu0 %v618
        %642 = vmatmul.bf16.gmra.mxu0 %v562
        %v643 = vpop.f32.mrf.mxu0
        %v644 = vadd.f32 %v584, %v643
        %v645 = vpop.f32.mrf.mxu0
        %v646 = vadd.f32 %v584, %v645
        %647 = vmatmul.bf16.gmra.mxu0 %v563
        %v648 = vpop.f32.mrf.mxu0
        %v649 = vadd.f32 %v584, %v648
        %v650 = vpop.f32.mrf.mxu0
        %v651 = vadd.f32 %v584, %v650
        %652 = vdwg.mxu0
        %v653 = vmax.f32 %v644, 0.0
        %v654 = vmax.f32 %v646, 0.0
        %v655 = vmax.f32 %v649, 0.0
        %v656 = vmax.f32 %v651, 0.0
        %v657 = vpack.c.bf16 %v654, %v653
        %v658 = vpack.c.bf16 %v656, %v655
        %s659 = scalar_lea.vmem [#allocation8], 128
        %v660 = vld [vmem:[%s659] sm:$0xf]
        %v661 = vld [vmem:[%s659 + $0x4] sm:$0xf]
        %v662 = vld [vmem:[%s659 + $0x8] sm:$0xf]
        %v663 = vld [vmem:[%s659 + $0xc] sm:$0xf]
        %v664 = vld [vmem:[%s659 + $0x10] sm:$0xf]
        %v665 = vld [vmem:[%s659 + $0x14] sm:$0xf]
        %v666 = vld [vmem:[%s659 + $0x18] sm:$0xf]
        %v667 = vld [vmem:[%s659 + $0x1c] sm:$0xf]
        %v668 = vld [vmem:[%s659 + $0x20] sm:$0xf]
        %v669 = vld [vmem:[%s659 + $0x24] sm:$0xf]
        %v670 = vld [vmem:[%s659 + $0x28] sm:$0xf]
        %v671 = vld [vmem:[%s659 + $0x2c] sm:$0xf]
        %v672 = vld [vmem:[%s659 + $0x30] sm:$0xf]
        %v673 = vld [vmem:[%s659 + $0x34] sm:$0xf]
        %v674 = vld [vmem:[%s659 + $0x38] sm:$0xf]
        %v675 = vld [vmem:[%s659 + $0x3c] sm:$0xf]
        %s676 = scalar_lea.vmem %s5, 2
        %v677 = vld [vmem:[%s676] sm:$0x1]
        %v679 = vperm.slane %v677, 0
        %v697 = vunpack.c.l.b16 %v660
        %v698 = vunpack.c.l.b16 %v661
        %v699 = vunpack.c.l.b16 %v662
        %v700 = vunpack.c.l.b16 %v663
        %v701 = vunpack.c.l.b16 %v664
        %v702 = vunpack.c.l.b16 %v665
        %v703 = vunpack.c.l.b16 %v666
        %v704 = vunpack.c.l.b16 %v667
        %v705 = vunpack.c.l.b16 %v668
        %v706 = vunpack.c.l.b16 %v669
        %v707 = vunpack.c.l.b16 %v670
        %v708 = vunpack.c.l.b16 %v671
        %v709 = vunpack.c.l.b16 %v672
        %v710 = vunpack.c.l.b16 %v673
        %v711 = vunpack.c.l.b16 %v674
        %v712 = vunpack.c.l.b16 %v675
        %v713 = vpack.c.b16 %v698, %v697
        %v714 = vpack.c.b16 %v700, %v699
        %v715 = vpack.c.b16 %v702, %v701
        %v716 = vpack.c.b16 %v704, %v703
        %v717 = vpack.c.b16 %v706, %v705
        %v718 = vpack.c.b16 %v708, %v707
        %v719 = vpack.c.b16 %v710, %v709
        %v720 = vpack.c.b16 %v712, %v711
        %729 = vmatpush.bf16.msra.mxu0 %v720
        %730 = vmatpush.bf16.msra.mxu0 %v719
        %731 = vmatpush.bf16.msra.mxu0 %v718
        %732 = vmatpush.bf16.msra.mxu0 %v717
        %733 = vmatpush.bf16.msra.mxu0 %v716
        %734 = vmatpush.bf16.msra.mxu0 %v715
        %735 = vmatpush.bf16.msra.mxu0 %v714
        %736 = vmatpush.bf16.msra.mxu0 %v713
        %737 = vmatmul.bf16.gmra.mxu0 %v657
        %v738 = vpop.f32.mrf.mxu0
        %v739 = vadd.f32 %v679, %v738
        %v740 = vpop.f32.mrf.mxu0
        %v741 = vadd.f32 %v679, %v740
        %742 = vmatmul.bf16.gmra.mxu0 %v658
        %v743 = vpop.f32.mrf.mxu0
        %v744 = vadd.f32 %v679, %v743
        %v745 = vpop.f32.mrf.mxu0
        %v746 = vadd.f32 %v679, %v745
        %747 = vdwg.mxu0
        %v748 = vpack.c.bf16 %v739, %v739
        %v749 = vpack.c.bf16 %v741, %v741
        %v750 = vpack.c.bf16 %v744, %v744
        %v751 = vpack.c.bf16 %v746, %v746
        %752 = vst [vmem:[%s346] sm:$0xf] %v748
        %753 = vst [vmem:[%s346 + $0x4] sm:$0xf] %v749
        %754 = vst [vmem:[%s346 + $0x8] sm:$0xf] %v750
        %755 = vst [vmem:[%s346 + $0xc] sm:$0xf] %v751
        %s756 = sand.u32 %s171, 1
        %s757 = scalar_lea.sflag [#allocation4], %s756
        %s758 = sand.u32 %s171, 1
        %s759 = smul.addr %s758, 16
        %s760 = scalar_lea.vmem [#allocation10], %s759
        // Predicated region
        $region61: #{tpu_custom_call.1} parent=43 // pred_check
          %p761 = pneg %p181
        $region62: #{tpu_custom_call.1} parent=43 // pred_check_branch
          %763 = sbr.rel (%p761) target = $region64
        $region63: #{tpu_custom_call.1} parent=43 // pred_region
          %s764 = smul.u32 4, %s27
          %766 = vsyncadd %s757, 0
          %s767 = smul.addr %s764, 4
          %s768 = scalar_lea.hbm %s6, %s767
          %s769 = sshll.u32 %s760, 4
          %s770 = int_to_ptr.vmem [resolvable:$true] %s769
          %s771 = sshll.u32 %s768, 4
          %s772 = int_to_ptr.hbm [resolvable:$true] %s771
          %777 = dma.vmem_to_hbm [thread:$0]  %s770, 256, %s772, %s757, 64, 64, 4
        $region64: #{tpu_custom_call.1} parent=43 // pred_fallthru
          _
      $region44: #{tpu_custom_call.1} parent=5 // pred_fallthru
        _
      %p778 = scmp.le.s32.totalorder 2, %s22
      // Predicated region
      $region65: #{tpu_custom_call.1} parent=5 // pred_check
        %p779 = pneg %p778
      $region66: #{tpu_custom_call.1} parent=5 // pred_check_branch
        %781 = sbr.rel (%p779) target = $region68
      $region67: #{tpu_custom_call.1} parent=5 // pred_region
        %s782 = ssub.s32 %s22, 2
        // Predicated region
        $region69: #{tpu_custom_call.1} parent=67 // pred_check
          %p783 = pneg %p187
        $region70: #{tpu_custom_call.1} parent=67 // pred_check_branch
          %785 = sbr.rel (%p783) target = $region72
        $region71: #{tpu_custom_call.1} parent=67 // pred_region
          %s786 = sand.u32 %s172, 1
          %s787 = scalar_lea.sflag [#allocation4], %s786
          %s788 = sand.u32 %s172, 1
          %s789 = smul.addr %s788, 16
          %s790 = scalar_lea.vmem [#allocation10], %s789
          %792 = dma.done %s787, 256
        $region72: #{tpu_custom_call.1} parent=67 // pred_fallthru
          _
      $region68: #{tpu_custom_call.1} parent=5 // pred_fallthru
        _
    $region6: #{tpu_custom_call.1} parent=1 // loop_footer
      %s26 = sadd.s32 1, %s22
    $region7: #{tpu_custom_call.1} parent=1 // loop_footer_branch
      %21 = sbr.rel target = $region3
    $region8: #{tpu_custom_call.1} parent=1 // loop_exit
      _
    %793 = vsyncpa [#allocation3], 1
    %s794 = scalar_lea.sflag [#allocation3], 1
    %795 = vsyncpa %s794, 1
    %796 = vsyncpa [#allocation6], 1
    %s797 = scalar_lea.sflag [#allocation6], 1
    %798 = vsyncpa %s797, 1
    %799 = vsyncpa [#allocation9], 1
    %800 = vsyncpa [#allocation4], 1
    %s801 = scalar_lea.sflag [#allocation4], 1
    %802 = vsyncpa %s801, 1

</llo_original>
